<compile_context>
chip_gen: v7x
topology: tpu7x:2x2x1
jax: 0.10.0
libtpu: 0.0.40
codegen_flags: <defaults>
</compile_context>

<pallas_src>
import functools

import jax
import jax.numpy as jnp
from jax.experimental import pallas as pl
from jax.experimental.pallas import tpu as pltpu


def _round_up(n, m):
    return (n + m - 1) // m * m


def _cdiv(a, b):
    return -(-a // b)


def _generator_kernel(x_ref, h_ref,
                      wgx_ref, wgh_ref, bg_ref,
                      gamma_ref, beta_ref,
                      wlin_ref, blin_ref,
                      scores_ref, hnext_ref,
                      *, hidden_size, hpad):
    H, Hpad = hidden_size, hpad
    mxu_dt = wgx_ref.dtype                       # f32 or bf16 (weights' dtype)

    x = x_ref[...].astype(jnp.float32)           # (TB, C)
    h = h_ref[...].astype(jnp.float32)           # (TB, Hpad)  padded lanes == 0

    # --- GRU gate matmuls (PyTorch GRUCell semantics) ---
    # gx blocks: [i_r | i_z | i_n]   gh blocks: [h_r | h_z | h_n]
    gx = jnp.dot(x.astype(mxu_dt), wgx_ref[...],
                 preferred_element_type=jnp.float32)        # (TB, 3*Hpad)
    gh = jnp.dot(h.astype(mxu_dt), wgh_ref[...],
                 preferred_element_type=jnp.float32)        # (TB, 3*Hpad)

    # Bias layout: [ b_ir+b_hr | b_iz+b_hz | b_in | b_hn ]  (1, 4*Hpad)
    b_rz = bg_ref[:, 0 * Hpad:2 * Hpad]
    b_in = bg_ref[:, 2 * Hpad:3 * Hpad]
    b_hn = bg_ref[:, 3 * Hpad:4 * Hpad]

    rz = gx[:, :2 * Hpad] + gh[:, :2 * Hpad] + b_rz          # lane-aligned
    r = jax.nn.sigmoid(rz[:, :Hpad])
    z = jax.nn.sigmoid(rz[:, Hpad:])
    i_n = gx[:, 2 * Hpad:] + b_in
    h_n = gh[:, 2 * Hpad:] + b_hn

    n = jnp.tanh(i_n + r * h_n)
    h_new = (1.0 - z) * n + z * h                # (TB, Hpad); padded lanes == 0

    # --- LayerNorm over the true H lanes (eps = 1e-5, elementwise affine) ---
    # Padded lanes of h_new are exactly 0, so sums over Hpad lanes equal sums
    # over the true H lanes; use E[x^2] - mean^2 (no lane mask needed).
    inv_h = 1.0 / H
    mean = jnp.sum(h_new, axis=-1, keepdims=True) * inv_h
    var = jnp.sum(h_new * h_new, axis=-1, keepdims=True) * inv_h - mean * mean
    # Fold gamma into the rsqrt scale (one fewer full-width VPU multiply).
    scale = gamma_ref[...] * jax.lax.rsqrt(var + 1e-5)
    h_norm = (h_new - mean) * scale + beta_ref[...]   # padded lanes -> 0

    # --- Linear: hidden -> channels (lane-dense Cpad output) ---
    scores = jnp.dot(h_norm.astype(mxu_dt), wlin_ref[...],
                     preferred_element_type=jnp.float32) + blin_ref[...]

    scores_ref[...] = scores.astype(scores_ref.dtype)
    hnext_ref[...] = h_norm.astype(hnext_ref.dtype)


def prepare_params(params, channels, hidden_size, mxu_dtype=jnp.bfloat16):
    """One-time packing of PyTorch-layout weights into lane-aligned TPU blocks.

    Done once outside the per-timestep hot path: transposes, gate packing,
    lane padding to multiples of 128, and (default) bf16 cast of the matmul
    operand weights (biases / LayerNorm affine stay f32; gate math and
    LayerNorm run in f32 inside the kernel).
    """
    C, H = channels, hidden_size
    Hpad = _round_up(H, 128)
    Cpad = _round_up(C, 128)

    wih = params["weight_ih"]                    # (3H, C) rows = [r; z; n]
    whh = params["weight_hh"]                    # (3H, H)
    bih = params["bias_ih"]                      # (3H,)
    bhh = params["bias_hh"]                      # (3H,)

    f32 = jnp.float32
    w_gx = jnp.zeros((C, 3 * Hpad), f32)
    w_gx = w_gx.at[:, 0 * Hpad:0 * Hpad + H].set(wih[0 * H:1 * H].T)   # W_ir^T
    w_gx = w_gx.at[:, 1 * Hpad:1 * Hpad + H].set(wih[1 * H:2 * H].T)   # W_iz^T
    w_gx = w_gx.at[:, 2 * Hpad:2 * Hpad + H].set(wih[2 * H:3 * H].T)   # W_in^T

    w_gh = jnp.zeros((Hpad, 3 * Hpad), f32)
    w_gh = w_gh.at[:H, 0 * Hpad:0 * Hpad + H].set(whh[0 * H:1 * H].T)  # W_hr^T
    w_gh = w_gh.at[:H, 1 * Hpad:1 * Hpad + H].set(whh[1 * H:2 * H].T)  # W_hz^T
    w_gh = w_gh.at[:H, 2 * Hpad:2 * Hpad + H].set(whh[2 * H:3 * H].T)  # W_hn^T

    # Bias layout: [ b_ir+b_hr | b_iz+b_hz | b_in | b_hn ]
    b_g = jnp.zeros((1, 4 * Hpad), f32)
    b_g = b_g.at[0, 0 * Hpad:0 * Hpad + H].set(bih[0 * H:1 * H] + bhh[0 * H:1 * H])
    b_g = b_g.at[0, 1 * Hpad:1 * Hpad + H].set(bih[1 * H:2 * H] + bhh[1 * H:2 * H])
    b_g = b_g.at[0, 2 * Hpad:2 * Hpad + H].set(bih[2 * H:3 * H])
    b_g = b_g.at[0, 3 * Hpad:3 * Hpad + H].set(bhh[2 * H:3 * H])

    gamma = jnp.zeros((1, Hpad), f32).at[0, :H].set(params["ln_weight"])
    beta = jnp.zeros((1, Hpad), f32).at[0, :H].set(params["ln_bias"])

    w_lin = jnp.zeros((Hpad, Cpad), f32).at[:H, :C].set(params["lin_weight"].T)
    b_lin = jnp.zeros((1, Cpad), f32).at[0, :C].set(params["lin_bias"])

    return {
        "w_gx": w_gx.astype(mxu_dtype),
        "w_gh": w_gh.astype(mxu_dtype),
        "b_g": b_g,
        "gamma": gamma,
        "beta": beta,
        "w_lin": w_lin.astype(mxu_dtype),
        "b_lin": b_lin,
    }


def generator_forward(x, h, packed, *, block_b=256):
    """x: (B, C) f32, h: (B, H) f32 -> (scores (B, C), next_hidden (B, H))."""
    B, C = x.shape
    H = h.shape[1]
    Hpad = packed["w_gh"].shape[0]
    Cpad = packed["w_lin"].shape[1]

    # --- Batch tile selection ---
    # Minimize padding waste (instead of padding to a full block_b tile) and
    # force >= 2 grid steps whenever the batch can be split, so the single
    # "parallel" grid axis shards across both TensorCores on v7x.
    nt = max(1, _cdiv(B, block_b))
    if nt == 1 and B > 8:
        nt = 2
    TB = _round_up(_cdiv(B, nt), 8)              # sublane-aligned batch tile
    Bpad = _round_up(B, TB)
    nt = Bpad // TB

    x_p = jnp.pad(x, ((0, Bpad - B), (0, 0))) if Bpad != B else x
    h_p = jnp.pad(h, ((0, Bpad - B), (0, Hpad - H)))

    # Constant-index weights: block index never changes, so a second pipeline
    # buffer is pure VMEM waste -> single-buffer them.
    def const_spec(arr):
        nd = arr.ndim
        return pl.BlockSpec(arr.shape, lambda i, _nd=nd: (0,) * _nd,
                            pipeline_mode=pl.Buffered(1))

    in_specs = [
        pl.BlockSpec((TB, C), lambda i: (i, 0)),          # x tile
        pl.BlockSpec((TB, Hpad), lambda i: (i, 0)),       # h tile
        const_spec(packed["w_gx"]),
        const_spec(packed["w_gh"]),
        const_spec(packed["b_g"]),
        const_spec(packed["gamma"]),
        const_spec(packed["beta"]),
        const_spec(packed["w_lin"]),
        const_spec(packed["b_lin"]),
    ]
    out_specs = (pl.BlockSpec((TB, Cpad), lambda i: (i, 0)),
                 pl.BlockSpec((TB, Hpad), lambda i: (i, 0)))

    # Explicit VMEM budget: weights x1 buffer + activation tiles x2 buffers,
    # with headroom; capped at 48 MiB to stay inside v7x's 64 MiB physical.
    weight_keys = ("w_gx", "w_gh", "b_g", "gamma", "beta", "w_lin", "b_lin")
    weight_bytes = sum(int(packed[k].size) * packed[k].dtype.itemsize
                       for k in weight_keys)
    act_tile_bytes = 4 * TB * (C + Hpad + Cpad + Hpad)        # f32 tiles
    vmem_bytes = weight_bytes + 2 * act_tile_bytes
    vmem_bytes = int(vmem_bytes * 1.25) + (2 << 20)           # headroom
    vmem_bytes = max(vmem_bytes, 16 << 20)
    vmem_bytes = min(vmem_bytes, 48 << 20)

    kernel = functools.partial(_generator_kernel, hidden_size=H, hpad=Hpad)

    scores_p, hnext_p = pl.pallas_call(
        kernel,
        out_shape=(jax.ShapeDtypeStruct((Bpad, Cpad), jnp.float32),
                   jax.ShapeDtypeStruct((Bpad, Hpad), jnp.float32)),
        grid=(nt,),
        in_specs=in_specs,
        out_specs=out_specs,
        compiler_params=pltpu.CompilerParams(
            dimension_semantics=("parallel",),
            vmem_limit_bytes=vmem_bytes),
    )(x_p, h_p, packed["w_gx"], packed["w_gh"], packed["b_g"],
      packed["gamma"], packed["beta"], packed["w_lin"], packed["b_lin"])

    return scores_p[:B, :C], hnext_p[:B, :H]


def init_params(key, channels, hidden_size):
    """Deterministic synthetic parameters, PyTorch-style uniform(-k, k) init."""
    ks = jax.random.split(key, 8)
    k_rnn = 1.0 / jnp.sqrt(hidden_size)
    k_lin = 1.0 / jnp.sqrt(hidden_size)
    u = lambda k, shape, b: jax.random.uniform(k, shape, jnp.float32, -b, b)
    return {
        "weight_ih": u(ks[0], (3 * hidden_size, channels), k_rnn),
        "weight_hh": u(ks[1], (3 * hidden_size, hidden_size), k_rnn),
        "bias_ih":   u(ks[2], (3 * hidden_size,), k_rnn),
        "bias_hh":   u(ks[3], (3 * hidden_size,), k_rnn),
        "ln_weight": jnp.ones((hidden_size,), jnp.float32),
        "ln_bias":   jnp.zeros((hidden_size,), jnp.float32),
        "lin_weight": u(ks[4], (channels, hidden_size), k_lin),
        "lin_bias":   u(ks[5], (channels,), k_lin),
    }


def _reference_forward(x, h, p):
    """Pure-JAX reference mirroring PyTorch GRUCell + LayerNorm + Linear."""
    H = h.shape[1]
    gi = x @ p["weight_ih"].T + p["bias_ih"]
    gh = h @ p["weight_hh"].T + p["bias_hh"]
    i_r, i_z, i_n = gi[:, :H], gi[:, H:2 * H], gi[:, 2 * H:]
    h_r, h_z, h_n = gh[:, :H], gh[:, H:2 * H], gh[:, 2 * H:]
    r = jax.nn.sigmoid(i_r + h_r)
    z = jax.nn.sigmoid(i_z + h_z)
    n = jnp.tanh(i_n + r * h_n)
    h_new = (1.0 - z) * n + z * h
    mean = jnp.mean(h_new, -1, keepdims=True)
    var = jnp.mean((h_new - mean) ** 2, -1, keepdims=True)
    h_norm = (h_new - mean) / jnp.sqrt(var + 1e-5)
    h_norm = h_norm * p["ln_weight"] + p["ln_bias"]
    scores = h_norm @ p["lin_weight"].T + p["lin_bias"]
    return scores, h_norm


if __name__ == "__main__":
    batch, channels, hidden_size = 8, 4, 32

    key = jax.random.PRNGKey(0)
    k_param, k_x, k_h = jax.random.split(key, 3)

    params = init_params(k_param, channels, hidden_size)
    x = jax.random.normal(k_x, (batch, channels), jnp.float32)
    h = jax.random.normal(k_h, (batch, hidden_size), jnp.float32)

    ref_scores, ref_hidden = _reference_forward(x, h, params)

    # f32 MXU validation path — tight tolerance vs the PyTorch-equivalent ref.
    packed_f32 = prepare_params(params, channels, hidden_size,
                                mxu_dtype=jnp.float32)
    scores, next_hidden = generator_forward(x, h, packed_f32)
    jax.block_until_ready((scores, next_hidden))
    assert jnp.allclose(scores, ref_scores, atol=1e-4, rtol=1e-4)
    assert jnp.allclose(next_hidden, ref_hidden, atol=1e-4, rtol=1e-4)

    # bf16 weights (production default) — gate math / LayerNorm stay f32.
    packed_bf16 = prepare_params(params, channels, hidden_size)
    scores_bf, next_hidden_bf = generator_forward(x, h, packed_bf16)
    jax.block_until_ready((scores_bf, next_hidden_bf))
    assert jnp.allclose(scores_bf, ref_scores, atol=1e-1, rtol=1e-1)
    assert jnp.allclose(next_hidden_bf, ref_hidden, atol=1e-1, rtol=1e-1)

    print("KERNEL_OK")
</pallas_src>

<mosaic_0001>
module attributes {stable_mosaic.version = 11 : i64} {
  func.func @_generator_kernel(%arg0: i32, %arg1: memref<8x4xf32, #tpu.memory_space<vmem>>, %arg2: memref<8x128xf32, #tpu.memory_space<vmem>>, %arg3: memref<4x384xf32, #tpu.memory_space<vmem>>, %arg4: memref<128x384xf32, #tpu.memory_space<vmem>>, %arg5: memref<1x512xf32, #tpu.memory_space<vmem>>, %arg6: memref<1x128xf32, #tpu.memory_space<vmem>>, %arg7: memref<1x128xf32, #tpu.memory_space<vmem>>, %arg8: memref<128x128xf32, #tpu.memory_space<vmem>>, %arg9: memref<1x128xf32, #tpu.memory_space<vmem>>, %arg10: memref<8x128xf32, #tpu.memory_space<vmem>>, %arg11: memref<8x128xf32, #tpu.memory_space<vmem>>) attributes {dimension_semantics = [#tpu.dimension_semantics<parallel>], iteration_bounds = array<i64: 1>, scalar_prefetch = 0 : i64, scratch_operands = 0 : i64, tpu.core_type = #tpu.core_type<tc>, window_params = [{transform_indices = @transform_0, window_bounds = array<i64: 8, 4>}, {transform_indices = @transform_1, window_bounds = array<i64: 8, 128>}, {pipeline_mode = #tpu.pipeline_mode<synchronous>, transform_indices = @transform_2, window_bounds = array<i64: 4, 384>}, {pipeline_mode = #tpu.pipeline_mode<synchronous>, transform_indices = @transform_3, window_bounds = array<i64: 128, 384>}, {pipeline_mode = #tpu.pipeline_mode<synchronous>, transform_indices = @transform_4, window_bounds = array<i64: 1, 512>}, {pipeline_mode = #tpu.pipeline_mode<synchronous>, transform_indices = @transform_5, window_bounds = array<i64: 1, 128>}, {pipeline_mode = #tpu.pipeline_mode<synchronous>, transform_indices = @transform_6, window_bounds = array<i64: 1, 128>}, {pipeline_mode = #tpu.pipeline_mode<synchronous>, transform_indices = @transform_7, window_bounds = array<i64: 128, 128>}, {pipeline_mode = #tpu.pipeline_mode<synchronous>, transform_indices = @transform_8, window_bounds = array<i64: 1, 128>}, {transform_indices = @transform_9, window_bounds = array<i64: 8, 128>}, {transform_indices = @transform_10, window_bounds = array<i64: 8, 128>}]} {
    %c0 = arith.constant 0 : index
    %c0_0 = arith.constant 0 : index
    %0 = vector.load %arg1[%c0, %c0_0] : memref<8x4xf32, #tpu.memory_space<vmem>>, vector<8x4xf32>
    %c0_1 = arith.constant 0 : index
    %c0_2 = arith.constant 0 : index
    %1 = vector.load %arg2[%c0_1, %c0_2] : memref<8x128xf32, #tpu.memory_space<vmem>>, vector<8x128xf32>
    %c0_3 = arith.constant 0 : index
    %c0_4 = arith.constant 0 : index
    %2 = vector.load %arg3[%c0_3, %c0_4] : memref<4x384xf32, #tpu.memory_space<vmem>>, vector<4x384xf32>
    %cst = arith.constant dense<0.000000e+00> : vector<8x384xf32>
    %3 = tpu.matmul %0, %2, %cst {dimension_numbers = #tpu.dot_dimension_numbers<[1], [0], [0], [1], [0, 0, 1, 1], [], []>} : vector<8x4xf32>, vector<4x384xf32>, vector<8x384xf32> -> vector<8x384xf32>
    %c0_5 = arith.constant 0 : index
    %c0_6 = arith.constant 0 : index
    %4 = vector.load %arg4[%c0_5, %c0_6] : memref<128x384xf32, #tpu.memory_space<vmem>>, vector<128x384xf32>
    %cst_7 = arith.constant dense<0.000000e+00> : vector<8x384xf32>
    %5 = tpu.matmul %1, %4, %cst_7 {dimension_numbers = #tpu.dot_dimension_numbers<[1], [0], [0], [1], [0, 0, 1, 1], [], []>} : vector<8x128xf32>, vector<128x384xf32>, vector<8x384xf32> -> vector<8x384xf32>
    %c0_8 = arith.constant 0 : index
    %c0_9 = arith.constant 0 : index
    %6 = vector.load %arg5[%c0_8, %c0_9] : memref<1x512xf32, #tpu.memory_space<vmem>>, vector<1x256xf32>
    %c0_10 = arith.constant 0 : index
    %c256 = arith.constant 256 : index
    %7 = vector.load %arg5[%c0_10, %c256] : memref<1x512xf32, #tpu.memory_space<vmem>>, vector<1x128xf32>
    %c0_11 = arith.constant 0 : index
    %c384 = arith.constant 384 : index
    %8 = vector.load %arg5[%c0_11, %c384] : memref<1x512xf32, #tpu.memory_space<vmem>>, vector<1x128xf32>
    %9 = vector.extract_strided_slice %3 {offsets = [0, 0], sizes = [8, 256], strides = [1, 1]} : vector<8x384xf32> to vector<8x256xf32>
    %10 = vector.extract_strided_slice %5 {offsets = [0, 0], sizes = [8, 256], strides = [1, 1]} : vector<8x384xf32> to vector<8x256xf32>
    %11 = arith.addf %9, %10 : vector<8x256xf32>
    %12 = vector.broadcast %6 : vector<1x256xf32> to vector<8x256xf32>
    %13 = arith.addf %11, %12 : vector<8x256xf32>
    %14 = vector.extract_strided_slice %13 {offsets = [0, 0], sizes = [8, 128], strides = [1, 1]} : vector<8x256xf32> to vector<8x128xf32>
    %15 = arith.negf %14 : vector<8x128xf32>
    %16 = math.exp %15 : vector<8x128xf32>
    %cst_12 = arith.constant 1.000000e+00 : f32
    %17 = vector.broadcast %cst_12 : f32 to vector<8x128xf32>
    %18 = arith.addf %17, %16 : vector<8x128xf32>
    %19 = arith.divf %17, %18 : vector<8x128xf32>
    %20 = vector.extract_strided_slice %13 {offsets = [0, 128], sizes = [8, 128], strides = [1, 1]} : vector<8x256xf32> to vector<8x128xf32>
    %21 = arith.negf %20 : vector<8x128xf32>
    %22 = math.exp %21 : vector<8x128xf32>
    %cst_13 = arith.constant 1.000000e+00 : f32
    %23 = vector.broadcast %cst_13 : f32 to vector<8x128xf32>
    %24 = arith.addf %23, %22 : vector<8x128xf32>
    %25 = arith.divf %23, %24 : vector<8x128xf32>
    %26 = vector.extract_strided_slice %3 {offsets = [0, 256], sizes = [8, 128], strides = [1, 1]} : vector<8x384xf32> to vector<8x128xf32>
    %27 = vector.broadcast %7 : vector<1x128xf32> to vector<8x128xf32>
    %28 = arith.addf %26, %27 : vector<8x128xf32>
    %29 = vector.extract_strided_slice %5 {offsets = [0, 256], sizes = [8, 128], strides = [1, 1]} : vector<8x384xf32> to vector<8x128xf32>
    %30 = vector.broadcast %8 : vector<1x128xf32> to vector<8x128xf32>
    %31 = arith.addf %29, %30 : vector<8x128xf32>
    %32 = arith.mulf %19, %31 : vector<8x128xf32>
    %33 = arith.addf %28, %32 : vector<8x128xf32>
    %34 = math.tanh %33 : vector<8x128xf32>
    %cst_14 = arith.constant 1.000000e+00 : f32
    %35 = vector.broadcast %cst_14 : f32 to vector<8x128xf32>
    %36 = arith.subf %35, %25 : vector<8x128xf32>
    %37 = arith.mulf %36, %34 : vector<8x128xf32>
    %38 = arith.mulf %25, %1 : vector<8x128xf32>
    %39 = arith.addf %37, %38 : vector<8x128xf32>
    %cst_15 = arith.constant dense<0.000000e+00> : vector<8xf32>
    %40 = vector.multi_reduction <add>, %39, %cst_15 [1] : vector<8x128xf32> to vector<8xf32>
    %41 = vector.shape_cast %40 : vector<8xf32> to vector<8x1xf32>
    %cst_16 = arith.constant 3.125000e-02 : f32
    %42 = vector.broadcast %cst_16 : f32 to vector<8x1xf32>
    %43 = arith.mulf %41, %42 : vector<8x1xf32>
    %44 = arith.mulf %39, %39 : vector<8x128xf32>
    %cst_17 = arith.constant dense<0.000000e+00> : vector<8xf32>
    %45 = vector.multi_reduction <add>, %44, %cst_17 [1] : vector<8x128xf32> to vector<8xf32>
    %46 = vector.shape_cast %45 : vector<8xf32> to vector<8x1xf32>
    %cst_18 = arith.constant 3.125000e-02 : f32
    %47 = vector.broadcast %cst_18 : f32 to vector<8x1xf32>
    %48 = arith.mulf %46, %47 : vector<8x1xf32>
    %49 = arith.mulf %43, %43 : vector<8x1xf32>
    %50 = arith.subf %48, %49 : vector<8x1xf32>
    %c0_19 = arith.constant 0 : index
    %c0_20 = arith.constant 0 : index
    %51 = vector.load %arg6[%c0_19, %c0_20] : memref<1x128xf32, #tpu.memory_space<vmem>>, vector<1x128xf32>
    %cst_21 = arith.constant 9.99999974E-6 : f32
    %52 = vector.broadcast %cst_21 : f32 to vector<8x1xf32>
    %53 = arith.addf %50, %52 : vector<8x1xf32>
    %54 = math.rsqrt %53 : vector<8x1xf32>
    %55 = vector.broadcast %51 : vector<1x128xf32> to vector<8x128xf32>
    %56 = vector.broadcast %54 : vector<8x1xf32> to vector<8x128xf32>
    %57 = arith.mulf %55, %56 : vector<8x128xf32>
    %58 = vector.broadcast %43 : vector<8x1xf32> to vector<8x128xf32>
    %59 = arith.subf %39, %58 : vector<8x128xf32>
    %60 = arith.mulf %59, %57 : vector<8x128xf32>
    %c0_22 = arith.constant 0 : index
    %c0_23 = arith.constant 0 : index
    %61 = vector.load %arg7[%c0_22, %c0_23] : memref<1x128xf32, #tpu.memory_space<vmem>>, vector<1x128xf32>
    %62 = vector.broadcast %61 : vector<1x128xf32> to vector<8x128xf32>
    %63 = arith.addf %60, %62 : vector<8x128xf32>
    %c0_24 = arith.constant 0 : index
    %c0_25 = arith.constant 0 : index
    %64 = vector.load %arg8[%c0_24, %c0_25] : memref<128x128xf32, #tpu.memory_space<vmem>>, vector<128x128xf32>
    %cst_26 = arith.constant dense<0.000000e+00> : vector<8x128xf32>
    %65 = tpu.matmul %63, %64, %cst_26 {dimension_numbers = #tpu.dot_dimension_numbers<[1], [0], [0], [1], [0, 0, 1, 1], [], []>} : vector<8x128xf32>, vector<128x128xf32>, vector<8x128xf32> -> vector<8x128xf32>
    %c0_27 = arith.constant 0 : index
    %c0_28 = arith.constant 0 : index
    %66 = vector.load %arg9[%c0_27, %c0_28] : memref<1x128xf32, #tpu.memory_space<vmem>>, vector<1x128xf32>
    %67 = vector.broadcast %66 : vector<1x128xf32> to vector<8x128xf32>
    %68 = arith.addf %65, %67 : vector<8x128xf32>
    %c0_29 = arith.constant 0 : index
    %c0_30 = arith.constant 0 : index
    %69 = vector.load %arg10[%c0_29, %c0_30] : memref<8x128xf32, #tpu.memory_space<vmem>>, vector<8x128xf32>
    tpu.vector_store %arg10[%c0_29, %c0_30], %68 {strides = array<i32>} : memref<8x128xf32, #tpu.memory_space<vmem>>, vector<8x128xf32>,
    %c0_31 = arith.constant 0 : index
    %c0_32 = arith.constant 0 : index
    %70 = vector.load %arg11[%c0_31, %c0_32] : memref<8x128xf32, #tpu.memory_space<vmem>>, vector<8x128xf32>
    tpu.vector_store %arg11[%c0_31, %c0_32], %63 {strides = array<i32>} : memref<8x128xf32, #tpu.memory_space<vmem>>, vector<8x128xf32>,
    return
  }
  func.func @transform_0(%arg0: i32) -> (i32, i32) {
    %c0_i32 = arith.constant 0 : i32
    %c0_i32_0 = arith.constant 0 : i32
    return %arg0, %c0_i32 : i32, i32
  }
  func.func @transform_1(%arg0: i32) -> (i32, i32) {
    %c0_i32 = arith.constant 0 : i32
    %c0_i32_0 = arith.constant 0 : i32
    return %arg0, %c0_i32 : i32, i32
  }
  func.func @transform_2(%arg0: i32) -> (i32, i32) {
    %c0_i32 = arith.constant 0 : i32
    %c0_i32_0 = arith.constant 0 : i32
    %c0_i32_1 = arith.constant 0 : i32
    return %c0_i32, %c0_i32_0 : i32, i32
  }
  func.func @transform_3(%arg0: i32) -> (i32, i32) {
    %c0_i32 = arith.constant 0 : i32
    %c0_i32_0 = arith.constant 0 : i32
    %c0_i32_1 = arith.constant 0 : i32
    return %c0_i32, %c0_i32_0 : i32, i32
  }
  func.func @transform_4(%arg0: i32) -> (i32, i32) {
    %c0_i32 = arith.constant 0 : i32
    %c0_i32_0 = arith.constant 0 : i32
    %c0_i32_1 = arith.constant 0 : i32
    return %c0_i32, %c0_i32_0 : i32, i32
  }
  func.func @transform_5(%arg0: i32) -> (i32, i32) {
    %c0_i32 = arith.constant 0 : i32
    %c0_i32_0 = arith.constant 0 : i32
    %c0_i32_1 = arith.constant 0 : i32
    return %c0_i32, %c0_i32_0 : i32, i32
  }
  func.func @transform_6(%arg0: i32) -> (i32, i32) {
    %c0_i32 = arith.constant 0 : i32
    %c0_i32_0 = arith.constant 0 : i32
    %c0_i32_1 = arith.constant 0 : i32
    return %c0_i32, %c0_i32_0 : i32, i32
  }
  func.func @transform_7(%arg0: i32) -> (i32, i32) {
    %c0_i32 = arith.constant 0 : i32
    %c0_i32_0 = arith.constant 0 : i32
    %c0_i32_1 = arith.constant 0 : i32
    return %c0_i32, %c0_i32_0 : i32, i32
  }
  func.func @transform_8(%arg0: i32) -> (i32, i32) {
    %c0_i32 = arith.constant 0 : i32
    %c0_i32_0 = arith.constant 0 : i32
    %c0_i32_1 = arith.constant 0 : i32
    return %c0_i32, %c0_i32_0 : i32, i32
  }
  func.func @transform_9(%arg0: i32) -> (i32, i32) {
    %c0_i32 = arith.constant 0 : i32
    %c0_i32_0 = arith.constant 0 : i32
    return %arg0, %c0_i32 : i32, i32
  }
  func.func @transform_10(%arg0: i32) -> (i32, i32) {
    %c0_i32 = arith.constant 0 : i32
    %c0_i32_0 = arith.constant 0 : i32
    return %arg0, %c0_i32 : i32, i32
  }
}

</mosaic_0001>

<llo_original>
// kernel: tpu_custom_call.1
$region0: #{tpu_custom_call.1}
  #allocation0 [shape = 'u32[]', space=smem, size = 0x4, offset = 0x4, fixed_abs, tag = 'smem constant byte address 0x4 - core index']
  #allocation1 [shape = 'u32[144,128]{1,0:T(1,128)}', space=vmem, size = 0x12000, scoped, tag = 'internal scratch']
  %s0 = inlined_call_operand.vmem [shape: f32[8,4], index: 0, kind: input, shape index: {}]
  %s1 = inlined_call_operand.hbm [shape: f32[8,128], index: 1, kind: input, shape index: {}]
  %s2 = inlined_call_operand.vmem [shape: f32[4,384], index: 2, kind: input, shape index: {}]
  %s3 = inlined_call_operand.hbm [shape: f32[128,384], index: 3, kind: input, shape index: {}]
  %s4 = inlined_call_operand.vmem [shape: f32[1,512], index: 4, kind: input, shape index: {}]
  %s5 = inlined_call_operand.vmem [shape: f32[1,128], index: 5, kind: input, shape index: {}]
  %s6 = inlined_call_operand.vmem [shape: f32[1,128], index: 6, kind: input, shape index: {}]
  %s7 = inlined_call_operand.hbm [shape: f32[128,128], index: 7, kind: input, shape index: {}]
  %s8 = inlined_call_operand.vmem [shape: f32[1,128], index: 8, kind: input, shape index: {}]
  %s9 = inlined_call_operand.hbm [shape: f32[8,128], index: 9, kind: output, shape index: {0}]
  %s10 = inlined_call_operand.hbm [shape: f32[8,128], index: 10, kind: output, shape index: {1}]
  %11 = xla_tuple %s9, %s10
  %s12 = sld [smem:[#allocation0]]
  $region66: #{tpu_custom_call.1} parent=0
    _
  %s14 = ssub.s32 1, %s12
  %s15 = scalar_select 0, %s14, %s12
  $region1: #{tpu_custom_call.1} parent=0
    #allocation2 [shape = 'u8[4096]{0}', space=vmem, size = 0x1000, scoped, tag = 'input window, operand 1, single buffered']
    #allocation3 [shape = 's32[1]{0}', space=sflag, size = 0x4, scoped, tag = 'scoped memory for tpu_custom_call.1']
    #allocation4 [shape = 's32[1]{0}', space=sflag, size = 0x4, scoped, tag = 'scoped memory for tpu_custom_call.1']
    #allocation5 [shape = 'u8[196608]{0}', space=vmem, size = 0x30000, scoped, tag = 'input window, operand 3, single buffered']
    #allocation6 [shape = 's32[1]{0}', space=sflag, size = 0x4, scoped, tag = 'scoped memory for tpu_custom_call.1']
    #allocation7 [shape = 'u8[65536]{0}', space=vmem, size = 0x10000, scoped, tag = 'input window, operand 7, single buffered']
    #allocation8 [shape = 'u8[4096]{0}', space=vmem, size = 0x1000, scoped, tag = 'output window, operand 0, single buffered']
    #allocation9 [shape = 'u8[4096]{0}', space=vmem, size = 0x1000, scoped, tag = 'output window, operand 1, single buffered']
    #allocation10 [shape = 's32[1]{0}', space=sflag, size = 0x4, scoped, tag = 'scoped memory for tpu_custom_call.1']
    %16 = vsyncpa [#allocation3], 0
    %17 = vsyncpa [#allocation6], 0
    %18 = vsyncpa [#allocation4], 0
    %19 = vsyncpa [#allocation10], 0
    // Predicated region
    $region2: #{tpu_custom_call.1} parent=1 // pred_check
      _
    $region3: #{tpu_custom_call.1} parent=1 // pred_check_branch
      %21 = sbr.rel (0) target = $region5
    $region4: #{tpu_custom_call.1} parent=1 // pred_region
      _
    $region5: #{tpu_custom_call.1} parent=1 // pred_fallthru
      _
    // Predicated region
    $region6: #{tpu_custom_call.1} parent=1 // pred_check
      _
    $region7: #{tpu_custom_call.1} parent=1 // pred_check_branch
      %23 = sbr.rel (0) target = $region9
    $region8: #{tpu_custom_call.1} parent=1 // pred_region
      %s25 = ssub.s32 128, 128
      %26 = vsyncadd [#allocation3], %s25
      %s28 = sshll.u32 [#allocation2], 4
      %s29 = int_to_ptr.vmem [resolvable:$true] %s28
      %31 = dma.hbm_to_vmem [thread:$0]  %s1, 128, %s29, [#allocation3]
    $region9: #{tpu_custom_call.1} parent=1 // pred_fallthru
      _
    // Predicated region
    $region10: #{tpu_custom_call.1} parent=1 // pred_check
      _
    $region11: #{tpu_custom_call.1} parent=1 // pred_check_branch
      %33 = sbr.rel (0) target = $region13
    $region12: #{tpu_custom_call.1} parent=1 // pred_region
      _
    $region13: #{tpu_custom_call.1} parent=1 // pred_fallthru
      _
    // Predicated region
    $region14: #{tpu_custom_call.1} parent=1 // pred_check
      _
    $region15: #{tpu_custom_call.1} parent=1 // pred_check_branch
      %35 = sbr.rel (0) target = $region17
    $region16: #{tpu_custom_call.1} parent=1 // pred_region
      %s37 = ssub.s32 6144, 6144
      %38 = vsyncadd [#allocation6], %s37
      %s39 = sshll.u32 [#allocation5], 4
      %s40 = int_to_ptr.vmem [resolvable:$true] %s39
      %45 = dma.hbm_to_vmem [thread:$0]  %s3, 6144, %s40, [#allocation6], 384, 384, 24
    $region17: #{tpu_custom_call.1} parent=1 // pred_fallthru
      _
    // Predicated region
    $region18: #{tpu_custom_call.1} parent=1 // pred_check
      _
    $region19: #{tpu_custom_call.1} parent=1 // pred_check_branch
      %47 = sbr.rel (0) target = $region21
    $region20: #{tpu_custom_call.1} parent=1 // pred_region
      _
    $region21: #{tpu_custom_call.1} parent=1 // pred_fallthru
      _
    // Predicated region
    $region22: #{tpu_custom_call.1} parent=1 // pred_check
      _
    $region23: #{tpu_custom_call.1} parent=1 // pred_check_branch
      %49 = sbr.rel (0) target = $region25
    $region24: #{tpu_custom_call.1} parent=1 // pred_region
      _
    $region25: #{tpu_custom_call.1} parent=1 // pred_fallthru
      _
    // Predicated region
    $region26: #{tpu_custom_call.1} parent=1 // pred_check
      _
    $region27: #{tpu_custom_call.1} parent=1 // pred_check_branch
      %51 = sbr.rel (0) target = $region29
    $region28: #{tpu_custom_call.1} parent=1 // pred_region
      _
    $region29: #{tpu_custom_call.1} parent=1 // pred_fallthru
      _
    // Predicated region
    $region30: #{tpu_custom_call.1} parent=1 // pred_check
      _
    $region31: #{tpu_custom_call.1} parent=1 // pred_check_branch
      %53 = sbr.rel (0) target = $region33
    $region32: #{tpu_custom_call.1} parent=1 // pred_region
      %s55 = ssub.s32 2048, 2048
      %56 = vsyncadd [#allocation6], %s55
      %s57 = sshll.u32 [#allocation7], 4
      %s58 = int_to_ptr.vmem [resolvable:$true] %s57
      %63 = dma.hbm_to_vmem [thread:$0]  %s7, 2048, %s58, [#allocation6], 128, 128, 8
    $region33: #{tpu_custom_call.1} parent=1 // pred_fallthru
      _
    // Predicated region
    $region34: #{tpu_custom_call.1} parent=1 // pred_check
      _
    $region35: #{tpu_custom_call.1} parent=1 // pred_check_branch
      %65 = sbr.rel (0) target = $region37
    $region36: #{tpu_custom_call.1} parent=1 // pred_region
      _
    $region37: #{tpu_custom_call.1} parent=1 // pred_fallthru
      _
    // Predicated region
    $region38: #{tpu_custom_call.1} parent=1 // pred_check
      _
    $region39: #{tpu_custom_call.1} parent=1 // pred_check_branch
      %67 = sbr.rel (0) target = $region41
    $region40: #{tpu_custom_call.1} parent=1 // pred_region
      %68 = dma.done [#allocation3], 128
    $region41: #{tpu_custom_call.1} parent=1 // pred_fallthru
      _
    // Predicated region
    $region42: #{tpu_custom_call.1} parent=1 // pred_check
      _
    $region43: #{tpu_custom_call.1} parent=1 // pred_check_branch
      %70 = sbr.rel (0) target = $region45
    $region44: #{tpu_custom_call.1} parent=1 // pred_region
      %71 = dma.done [#allocation6], 6144
    $region45: #{tpu_custom_call.1} parent=1 // pred_fallthru
      _
    // Predicated region
    $region46: #{tpu_custom_call.1} parent=1 // pred_check
      _
    $region47: #{tpu_custom_call.1} parent=1 // pred_check_branch
      %73 = sbr.rel (0) target = $region49
    $region48: #{tpu_custom_call.1} parent=1 // pred_region
      %74 = dma.done [#allocation6], 2048
    $region49: #{tpu_custom_call.1} parent=1 // pred_fallthru
      _
    %v75 = vld [vmem:[%s0] sm:$0xff]
    %v76 = vld [vmem:[#allocation2] sm:$0xff]
    %v77 = vld [vmem:[%s2] sm:$0xff]
    %v78 = vld [vmem:[%s2 + $0x8] sm:$0xf]
    %v81 = vcombine.high %v77, %v77
    %vm82 = vcmask 31744
    %v84 = vsel %vm82, %v75, 0
    %vm86 = vcmask 1043456
    %v87 = vsel %vm86, %v77, 0
    %v89 = vsel %vm86, %v81, 0
    %v91 = vsel %vm86, %v78, 0
    %93 = vmatprep.subr.mxu0 %v89
    %94 = vmatpush1.msra.mxu0 %v87
    %95 = vmatprep.subr.mxu0 0.0
    %96 = vmatpush1.msra.mxu0 0.0
    %97 = vmatprep.subr.mxu0 0.0
    %98 = vmatpush1.msra.mxu0 0.0
    %99 = vmatprep.subr.mxu0 0.0
    %100 = vmatpush1.msra.mxu0 0.0
    %101 = vmatprep.subr.mxu0 0.0
    %102 = vmatpush1.msra.mxu0 0.0
    %103 = vmatprep.subr.mxu0 0.0
    %104 = vmatpush1.msra.mxu0 0.0
    %105 = vmatprep.subr.mxu0 0.0
    %106 = vmatpush1.msra.mxu0 0.0
    %107 = vmatprep.subr.mxu0 0.0
    %108 = vmatpush1.msra.mxu0 0.0
    %109 = vmatprep.subr.mxu0 0.0
    %110 = vmatpush1.msra.mxu0 0.0
    %111 = vmatprep.subr.mxu0 0.0
    %112 = vmatpush1.msra.mxu0 0.0
    %113 = vmatprep.subr.mxu0 0.0
    %114 = vmatpush1.msra.mxu0 0.0
    %115 = vmatprep.subr.mxu0 0.0
    %116 = vmatpush1.msra.mxu0 0.0
    %117 = vmatprep.subr.mxu0 0.0
    %118 = vmatpush1.msra.mxu0 0.0
    %119 = vmatprep.subr.mxu0 0.0
    %120 = vmatpush1.msra.mxu0 0.0
    %121 = vmatprep.subr.mxu0 0.0
    %122 = vmatpush1.msra.mxu0 0.0
    %123 = vmatprep.subr.mxu0 0.0
    %124 = vmatpush1.msra.mxu0 0.0
    %125 = vmatprep.subr.mxu0 0.0
    %126 = vmatpush1.msra.mxu0 0.0
    %127 = vmatprep.subr.mxu0 0.0
    %128 = vmatpush1.msra.mxu0 0.0
    %129 = vmatprep.subr.mxu0 0.0
    %130 = vmatpush1.msra.mxu0 0.0
    %131 = vmatprep.subr.mxu0 0.0
    %132 = vmatpush1.msra.mxu0 0.0
    %133 = vmatprep.subr.mxu0 0.0
    %134 = vmatpush1.msra.mxu0 0.0
    %135 = vmatprep.subr.mxu0 0.0
    %136 = vmatpush1.msra.mxu0 0.0
    %137 = vmatprep.subr.mxu0 0.0
    %138 = vmatpush1.msra.mxu0 0.0
    %139 = vmatprep.subr.mxu0 0.0
    %140 = vmatpush1.msra.mxu0 0.0
    %141 = vmatprep.subr.mxu0 0.0
    %142 = vmatpush1.msra.mxu0 0.0
    %143 = vmatprep.subr.mxu0 0.0
    %144 = vmatpush1.msra.mxu0 0.0
    %145 = vmatprep.subr.mxu0 0.0
    %146 = vmatpush1.msra.mxu0 0.0
    %147 = vmatprep.subr.mxu0 0.0
    %148 = vmatpush1.msra.mxu0 0.0
    %149 = vmatprep.subr.mxu0 0.0
    %150 = vmatpush1.msra.mxu0 0.0
    %151 = vmatprep.subr.mxu0 0.0
    %152 = vmatpush1.msra.mxu0 0.0
    %153 = vmatprep.subr.mxu0 0.0
    %154 = vmatpush1.msra.mxu0 0.0
    %155 = vmatprep.subr.mxu0 0.0
    %156 = vmatpush1.msra.mxu0 0.0
    %157 = vmatprep.mubr.f32.mxu0 0.0
    %158 = vmatmul.mubr.f32.gmra.mrb[0].mxu0 %v84
    %v159 = vpop.f32.mrb[0].mxu0
    %v160 = vadd.f32 0.0, %v159
    %v161 = vpop.f32.mrb[0].mxu0
    %v162 = vadd.f32 0.0, %v161
    %163 = vdwg.mxu0
    %164 = vmatprep.subr.mxu0 0.0
    %165 = vmatpush1.msra.mxu0 %v91
    %166 = vmatprep.subr.mxu0 0.0
    %167 = vmatpush1.msra.mxu0 0.0
    %168 = vmatprep.subr.mxu0 0.0
    %169 = vmatpush1.msra.mxu0 0.0
    %170 = vmatprep.subr.mxu0 0.0
    %171 = vmatpush1.msra.mxu0 0.0
    %172 = vmatprep.subr.mxu0 0.0
    %173 = vmatpush1.msra.mxu0 0.0
    %174 = vmatprep.subr.mxu0 0.0
    %175 = vmatpush1.msra.mxu0 0.0
    %176 = vmatprep.subr.mxu0 0.0
    %177 = vmatpush1.msra.mxu0 0.0
    %178 = vmatprep.subr.mxu0 0.0
    %179 = vmatpush1.msra.mxu0 0.0
    %180 = vmatprep.subr.mxu0 0.0
    %181 = vmatpush1.msra.mxu0 0.0
    %182 = vmatprep.subr.mxu0 0.0
    %183 = vmatpush1.msra.mxu0 0.0
    %184 = vmatprep.subr.mxu0 0.0
    %185 = vmatpush1.msra.mxu0 0.0
    %186 = vmatprep.subr.mxu0 0.0
    %187 = vmatpush1.msra.mxu0 0.0
    %188 = vmatprep.subr.mxu0 0.0
    %189 = vmatpush1.msra.mxu0 0.0
    %190 = vmatprep.subr.mxu0 0.0
    %191 = vmatpush1.msra.mxu0 0.0
    %192 = vmatprep.subr.mxu0 0.0
    %193 = vmatpush1.msra.mxu0 0.0
    %194 = vmatprep.subr.mxu0 0.0
    %195 = vmatpush1.msra.mxu0 0.0
    %196 = vmatprep.subr.mxu0 0.0
    %197 = vmatpush1.msra.mxu0 0.0
    %198 = vmatprep.subr.mxu0 0.0
    %199 = vmatpush1.msra.mxu0 0.0
    %200 = vmatprep.subr.mxu0 0.0
    %201 = vmatpush1.msra.mxu0 0.0
    %202 = vmatprep.subr.mxu0 0.0
    %203 = vmatpush1.msra.mxu0 0.0
    %204 = vmatprep.subr.mxu0 0.0
    %205 = vmatpush1.msra.mxu0 0.0
    %206 = vmatprep.subr.mxu0 0.0
    %207 = vmatpush1.msra.mxu0 0.0
    %208 = vmatprep.subr.mxu0 0.0
    %209 = vmatpush1.msra.mxu0 0.0
    %210 = vmatprep.subr.mxu0 0.0
    %211 = vmatpush1.msra.mxu0 0.0
    %212 = vmatprep.subr.mxu0 0.0
    %213 = vmatpush1.msra.mxu0 0.0
    %214 = vmatprep.subr.mxu0 0.0
    %215 = vmatpush1.msra.mxu0 0.0
    %216 = vmatprep.subr.mxu0 0.0
    %217 = vmatpush1.msra.mxu0 0.0
    %218 = vmatprep.subr.mxu0 0.0
    %219 = vmatpush1.msra.mxu0 0.0
    %220 = vmatprep.subr.mxu0 0.0
    %221 = vmatpush1.msra.mxu0 0.0
    %222 = vmatprep.subr.mxu0 0.0
    %223 = vmatpush1.msra.mxu0 0.0
    %224 = vmatprep.subr.mxu0 0.0
    %225 = vmatpush1.msra.mxu0 0.0
    %226 = vmatprep.subr.mxu0 0.0
    %227 = vmatpush1.msra.mxu0 0.0
    %228 = vmatprep.mubr.f32.mxu0 0.0
    %229 = vmatmul.mubr.f32.gmra.mrb[0].mxu0 %v84
    %v230 = vpop.f32.mrb[0].mxu0
    %v231 = vadd.f32 0.0, %v230
    %v232 = vpop.f32.mrb[0].mxu0
    %233 = vdwg.mxu0
    %v234 = vld [vmem:[#allocation5] sm:$0xff]
    %v235 = vld [vmem:[#allocation5 + $0x8] sm:$0xff]
    %v236 = vld [vmem:[#allocation5 + $0x10] sm:$0xff]
    %v237 = vld [vmem:[#allocation5 + $0x18] sm:$0xff]
    %v238 = vld [vmem:[#allocation5 + $0x20] sm:$0xff]
    %v239 = vld [vmem:[#allocation5 + $0x28] sm:$0xff]
    %v240 = vld [vmem:[#allocation5 + $0x30] sm:$0xff]
    %v241 = vld [vmem:[#allocation5 + $0x38] sm:$0xff]
    %v242 = vld [vmem:[#allocation5 + $0x40] sm:$0xff]
    %v243 = vld [vmem:[#allocation5 + $0x48] sm:$0xff]
    %v244 = vld [vmem:[#allocation5 + $0x50] sm:$0xff]
    %v245 = vld [vmem:[#allocation5 + $0x58] sm:$0xff]
    %v246 = vld [vmem:[#allocation5 + $0x60] sm:$0xff]
    %v247 = vld [vmem:[#allocation5 + $0x68] sm:$0xff]
    %v248 = vld [vmem:[#allocation5 + $0x70] sm:$0xff]
    %v249 = vld [vmem:[#allocation5 + $0x78] sm:$0xff]
    %v250 = vld [vmem:[#allocation5 + $0x80] sm:$0xff]
    %v251 = vld [vmem:[#allocation5 + $0x88] sm:$0xff]
    %v252 = vld [vmem:[#allocation5 + $0x90] sm:$0xff]
    %v253 = vld [vmem:[#allocation5 + $0x98] sm:$0xff]
    %v254 = vld [vmem:[#allocation5 + $0xa0] sm:$0xff]
    %v255 = vld [vmem:[#allocation5 + $0xa8] sm:$0xff]
    %v256 = vld [vmem:[#allocation5 + $0xb0] sm:$0xff]
    %v257 = vld [vmem:[#allocation5 + $0xb8] sm:$0xff]
    %v258 = vld [vmem:[#allocation5 + $0xc0] sm:$0xff]
    %v259 = vld [vmem:[#allocation5 + $0xc8] sm:$0xff]
    %v260 = vld [vmem:[#allocation5 + $0xd0] sm:$0xff]
    %v261 = vld [vmem:[#allocation5 + $0xd8] sm:$0xff]
    %v262 = vld [vmem:[#allocation5 + $0xe0] sm:$0xff]
    %v263 = vld [vmem:[#allocation5 + $0xe8] sm:$0xff]
    %v264 = vld [vmem:[#allocation5 + $0xf0] sm:$0xff]
    %v265 = vld [vmem:[#allocation5 + $0xf8] sm:$0xff]
    %v266 = vld [vmem:[#allocation5 + $0x100] sm:$0xff]
    %v267 = vld [vmem:[#allocation5 + $0x108] sm:$0xff]
    %v268 = vld [vmem:[#allocation5 + $0x110] sm:$0xff]
    %v269 = vld [vmem:[#allocation5 + $0x118] sm:$0xff]
    %v270 = vld [vmem:[#allocation5 + $0x120] sm:$0xff]
    %v271 = vld [vmem:[#allocation5 + $0x128] sm:$0xff]
    %v272 = vld [vmem:[#allocation5 + $0x130] sm:$0xff]
    %v273 = vld [vmem:[#allocation5 + $0x138] sm:$0xff]
    %v274 = vld [vmem:[#allocation5 + $0x140] sm:$0xff]
    %v275 = vld [vmem:[#allocation5 + $0x148] sm:$0xff]
    %v276 = vld [vmem:[#allocation5 + $0x150] sm:$0xff]
    %v277 = vld [vmem:[#allocation5 + $0x158] sm:$0xff]
    %v278 = vld [vmem:[#allocation5 + $0x160] sm:$0xff]
    %v279 = vld [vmem:[#allocation5 + $0x168] sm:$0xff]
    %v280 = vld [vmem:[#allocation5 + $0x170] sm:$0xff]
    %v281 = vld [vmem:[#allocation5 + $0x178] sm:$0xff]
    %282 = vmatprep.subr.mxu0 %v235
    %283 = vmatpush1.msra.mxu0 %v234
    %284 = vmatprep.subr.mxu0 %v238
    %285 = vmatpush1.msra.mxu0 %v237
    %286 = vmatprep.subr.mxu0 %v241
    %287 = vmatpush1.msra.mxu0 %v240
    %288 = vmatprep.subr.mxu0 %v244
    %289 = vmatpush1.msra.mxu0 %v243
    %290 = vmatprep.subr.mxu0 %v247
    %291 = vmatpush1.msra.mxu0 %v246
    %292 = vmatprep.subr.mxu0 %v250
    %293 = vmatpush1.msra.mxu0 %v249
    %294 = vmatprep.subr.mxu0 %v253
    %295 = vmatpush1.msra.mxu0 %v252
    %296 = vmatprep.subr.mxu0 %v256
    %297 = vmatpush1.msra.mxu0 %v255
    %298 = vmatprep.subr.mxu0 %v259
    %299 = vmatpush1.msra.mxu0 %v258
    %300 = vmatprep.subr.mxu0 %v262
    %301 = vmatpush1.msra.mxu0 %v261
    %302 = vmatprep.subr.mxu0 %v265
    %303 = vmatpush1.msra.mxu0 %v264
    %304 = vmatprep.subr.mxu0 %v268
    %305 = vmatpush1.msra.mxu0 %v267
    %306 = vmatprep.subr.mxu0 %v271
    %307 = vmatpush1.msra.mxu0 %v270
    %308 = vmatprep.subr.mxu0 %v274
    %309 = vmatpush1.msra.mxu0 %v273
    %310 = vmatprep.subr.mxu0 %v277
    %311 = vmatpush1.msra.mxu0 %v276
    %312 = vmatprep.subr.mxu0 %v280
    %313 = vmatpush1.msra.mxu0 %v279
    %314 = vmatprep.subr.mxu0 0.0
    %315 = vmatpush1.msra.mxu0 0.0
    %316 = vmatprep.subr.mxu0 0.0
    %317 = vmatpush1.msra.mxu0 0.0
    %318 = vmatprep.subr.mxu0 0.0
    %319 = vmatpush1.msra.mxu0 0.0
    %320 = vmatprep.subr.mxu0 0.0
    %321 = vmatpush1.msra.mxu0 0.0
    %322 = vmatprep.subr.mxu0 0.0
    %323 = vmatpush1.msra.mxu0 0.0
    %324 = vmatprep.subr.mxu0 0.0
    %325 = vmatpush1.msra.mxu0 0.0
    %326 = vmatprep.subr.mxu0 0.0
    %327 = vmatpush1.msra.mxu0 0.0
    %328 = vmatprep.subr.mxu0 0.0
    %329 = vmatpush1.msra.mxu0 0.0
    %330 = vmatprep.subr.mxu0 0.0
    %331 = vmatpush1.msra.mxu0 0.0
    %332 = vmatprep.subr.mxu0 0.0
    %333 = vmatpush1.msra.mxu0 0.0
    %334 = vmatprep.subr.mxu0 0.0
    %335 = vmatpush1.msra.mxu0 0.0
    %336 = vmatprep.subr.mxu0 0.0
    %337 = vmatpush1.msra.mxu0 0.0
    %338 = vmatprep.subr.mxu0 0.0
    %339 = vmatpush1.msra.mxu0 0.0
    %340 = vmatprep.subr.mxu0 0.0
    %341 = vmatpush1.msra.mxu0 0.0
    %342 = vmatprep.subr.mxu0 0.0
    %343 = vmatpush1.msra.mxu0 0.0
    %344 = vmatprep.subr.mxu0 0.0
    %345 = vmatpush1.msra.mxu0 0.0
    %346 = vmatprep.mubr.f32.mxu0 0.0
    %347 = vmatmul.mubr.f32.gmra.mrb[0].mxu0 %v76
    %v348 = vpop.f32.mrb[0].mxu0
    %v349 = vadd.f32 0.0, %v348
    %v350 = vpop.f32.mrb[0].mxu0
    %v351 = vadd.f32 0.0, %v350
    %352 = vdwg.mxu0
    %353 = vmatprep.subr.mxu0 0.0
    %354 = vmatpush1.msra.mxu0 %v236
    %355 = vmatprep.subr.mxu0 0.0
    %356 = vmatpush1.msra.mxu0 %v239
    %357 = vmatprep.subr.mxu0 0.0
    %358 = vmatpush1.msra.mxu0 %v242
    %359 = vmatprep.subr.mxu0 0.0
    %360 = vmatpush1.msra.mxu0 %v245
    %361 = vmatprep.subr.mxu0 0.0
    %362 = vmatpush1.msra.mxu0 %v248
    %363 = vmatprep.subr.mxu0 0.0
    %364 = vmatpush1.msra.mxu0 %v251
    %365 = vmatprep.subr.mxu0 0.0
    %366 = vmatpush1.msra.mxu0 %v254
    %367 = vmatprep.subr.mxu0 0.0
    %368 = vmatpush1.msra.mxu0 %v257
    %369 = vmatprep.subr.mxu0 0.0
    %370 = vmatpush1.msra.mxu0 %v260
    %371 = vmatprep.subr.mxu0 0.0
    %372 = vmatpush1.msra.mxu0 %v263
    %373 = vmatprep.subr.mxu0 0.0
    %374 = vmatpush1.msra.mxu0 %v266
    %375 = vmatprep.subr.mxu0 0.0
    %376 = vmatpush1.msra.mxu0 %v269
    %377 = vmatprep.subr.mxu0 0.0
    %378 = vmatpush1.msra.mxu0 %v272
    %379 = vmatprep.subr.mxu0 0.0
    %380 = vmatpush1.msra.mxu0 %v275
    %381 = vmatprep.subr.mxu0 0.0
    %382 = vmatpush1.msra.mxu0 %v278
    %383 = vmatprep.subr.mxu0 0.0
    %384 = vmatpush1.msra.mxu0 %v281
    %385 = vmatprep.subr.mxu0 0.0
    %386 = vmatpush1.msra.mxu0 0.0
    %387 = vmatprep.subr.mxu0 0.0
    %388 = vmatpush1.msra.mxu0 0.0
    %389 = vmatprep.subr.mxu0 0.0
    %390 = vmatpush1.msra.mxu0 0.0
    %391 = vmatprep.subr.mxu0 0.0
    %392 = vmatpush1.msra.mxu0 0.0
    %393 = vmatprep.subr.mxu0 0.0
    %394 = vmatpush1.msra.mxu0 0.0
    %395 = vmatprep.subr.mxu0 0.0
    %396 = vmatpush1.msra.mxu0 0.0
    %397 = vmatprep.subr.mxu0 0.0
    %398 = vmatpush1.msra.mxu0 0.0
    %399 = vmatprep.subr.mxu0 0.0
    %400 = vmatpush1.msra.mxu0 0.0
    %401 = vmatprep.subr.mxu0 0.0
    %402 = vmatpush1.msra.mxu0 0.0
    %403 = vmatprep.subr.mxu0 0.0
    %404 = vmatpush1.msra.mxu0 0.0
    %405 = vmatprep.subr.mxu0 0.0
    %406 = vmatpush1.msra.mxu0 0.0
    %407 = vmatprep.subr.mxu0 0.0
    %408 = vmatpush1.msra.mxu0 0.0
    %409 = vmatprep.subr.mxu0 0.0
    %410 = vmatpush1.msra.mxu0 0.0
    %411 = vmatprep.subr.mxu0 0.0
    %412 = vmatpush1.msra.mxu0 0.0
    %413 = vmatprep.subr.mxu0 0.0
    %414 = vmatpush1.msra.mxu0 0.0
    %415 = vmatprep.subr.mxu0 0.0
    %416 = vmatpush1.msra.mxu0 0.0
    %417 = vmatprep.mubr.f32.mxu0 0.0
    %418 = vmatmul.mubr.f32.gmra.mrb[0].mxu0 %v76
    %v419 = vpop.f32.mrb[0].mxu0
    %v420 = vadd.f32 0.0, %v419
    %v421 = vpop.f32.mrb[0].mxu0
    %422 = vdwg.mxu0
    %v423 = vld [vmem:[%s4] sm:$0x3]
    %v424 = vld [vmem:[%s4 + $0x2] sm:$0x1]
    %v425 = vld [vmem:[%s4 + $0x3] sm:$0x1]
    %v426 = vadd.f32 %v160, %v349
    %v427 = vadd.f32 %v162, %v351
    %v429 = vlaneseq
    %v430 = vshrl.u32 %v429, 7
    %v431 = vsub.s32 0, %v430
    %v432 = vrot.slane %v423, %v431
    %v433 = vlaneseq
    %v434 = vshrl.u32 %v433, 7
    %v435 = vsub.s32 1, %v434
    %v436 = vrot.slane %v423, %v435
    %v439 = vadd.f32 %v426, %v432
    %v440 = vadd.f32 %v427, %v436
    %v441 = vxor.u32 %v439, 2147483648
    %v442 = vmul.f32 %v441, 1.442695
    %v443 = vpow.pop %v442
    %v444 = vadd.f32 %v443, 1.0
    %v445 = vrcp.pop %v444
    %v446 = vmul.f32 1.0, %v445
    %v447 = vxor.u32 %v440, 2147483648
    %v448 = vmul.f32 %v447, 1.442695
    %v449 = vpow.pop %v448
    %v450 = vadd.f32 %v449, 1.0
    %v451 = vrcp.pop %v450
    %v452 = vmul.f32 1.0, %v451
    %v454 = vlaneseq
    %v455 = vshrl.u32 %v454, 7
    %v456 = vsub.s32 0, %v455
    %v457 = vrot.slane %v424, %v456
    %v459 = vadd.f32 %v231, %v457
    %v461 = vlaneseq
    %v462 = vshrl.u32 %v461, 7
    %v463 = vsub.s32 0, %v462
    %v464 = vrot.slane %v425, %v463
    %v466 = vadd.f32 %v420, %v464
    %v467 = vmul.f32 %v446, %v466
    %v468 = vadd.f32 %v459, %v467
    %v469 = vtanh.pop %v468
    %v470 = vsub.f32 1.0, %v452
    %v471 = vmul.f32 %v470, %v469
    %v472 = vmul.f32 %v452, %v76
    %v473 = vadd.f32 %v471, %v472
    %474 = vadd.xlane.f32.xlu0 %v473
    %v475 = vpop.xlane.xlu0 %474
    %v476 = vmul.f32 %v475, 0.03125
    %v477 = vmul.f32 %v473, %v473
    %478 = vadd.xlane.f32.xlu0 %v477
    %v479 = vpop.xlane.xlu0 %478
    %v480 = vmul.f32 %v479, 0.03125
    %v481 = vmul.f32 %v476, %v476
    %v482 = vsub.f32 %v480, %v481
    %v483 = vld [vmem:[%s5] sm:$0x1]
    %v484 = vadd.f32 %v482, 1e-05
    %v485 = vrsqrt.pop %v484
    %v487 = vlaneseq
    %v488 = vshrl.u32 %v487, 7
    %v489 = vsub.s32 0, %v488
    %v490 = vrot.slane %v483, %v489
    %v492 = vmul.f32 %v490, %v485
    %v493 = vsub.f32 %v473, %v476
    %v494 = vmul.f32 %v493, %v492
    %v495 = vld [vmem:[%s6] sm:$0x1]
    %v497 = vlaneseq
    %v498 = vshrl.u32 %v497, 7
    %v499 = vsub.s32 0, %v498
    %v500 = vrot.slane %v495, %v499
    %v502 = vadd.f32 %v494, %v500
    %v503 = vld [vmem:[#allocation7] sm:$0xff]
    %v504 = vld [vmem:[#allocation7 + $0x8] sm:$0xff]
    %v505 = vld [vmem:[#allocation7 + $0x10] sm:$0xff]
    %v506 = vld [vmem:[#allocation7 + $0x18] sm:$0xff]
    %v507 = vld [vmem:[#allocation7 + $0x20] sm:$0xff]
    %v508 = vld [vmem:[#allocation7 + $0x28] sm:$0xff]
    %v509 = vld [vmem:[#allocation7 + $0x30] sm:$0xff]
    %v510 = vld [vmem:[#allocation7 + $0x38] sm:$0xff]
    %v511 = vld [vmem:[#allocation7 + $0x40] sm:$0xff]
    %v512 = vld [vmem:[#allocation7 + $0x48] sm:$0xff]
    %v513 = vld [vmem:[#allocation7 + $0x50] sm:$0xff]
    %v514 = vld [vmem:[#allocation7 + $0x58] sm:$0xff]
    %v515 = vld [vmem:[#allocation7 + $0x60] sm:$0xff]
    %v516 = vld [vmem:[#allocation7 + $0x68] sm:$0xff]
    %v517 = vld [vmem:[#allocation7 + $0x70] sm:$0xff]
    %v518 = vld [vmem:[#allocation7 + $0x78] sm:$0xff]
    %v519 = vld [vmem:[%s8] sm:$0x1]
    %v521 = vlaneseq
    %v522 = vshrl.u32 %v521, 7
    %v523 = vsub.s32 0, %v522
    %v524 = vrot.slane %v519, %v523
    %526 = vmatprep.subr.mxu0 0.0
    %527 = vmatpush1.msra.mxu0 %v503
    %528 = vmatprep.subr.mxu0 0.0
    %529 = vmatpush1.msra.mxu0 %v504
    %530 = vmatprep.subr.mxu0 0.0
    %531 = vmatpush1.msra.mxu0 %v505
    %532 = vmatprep.subr.mxu0 0.0
    %533 = vmatpush1.msra.mxu0 %v506
    %534 = vmatprep.subr.mxu0 0.0
    %535 = vmatpush1.msra.mxu0 %v507
    %536 = vmatprep.subr.mxu0 0.0
    %537 = vmatpush1.msra.mxu0 %v508
    %538 = vmatprep.subr.mxu0 0.0
    %539 = vmatpush1.msra.mxu0 %v509
    %540 = vmatprep.subr.mxu0 0.0
    %541 = vmatpush1.msra.mxu0 %v510
    %542 = vmatprep.subr.mxu0 0.0
    %543 = vmatpush1.msra.mxu0 %v511
    %544 = vmatprep.subr.mxu0 0.0
    %545 = vmatpush1.msra.mxu0 %v512
    %546 = vmatprep.subr.mxu0 0.0
    %547 = vmatpush1.msra.mxu0 %v513
    %548 = vmatprep.subr.mxu0 0.0
    %549 = vmatpush1.msra.mxu0 %v514
    %550 = vmatprep.subr.mxu0 0.0
    %551 = vmatpush1.msra.mxu0 %v515
    %552 = vmatprep.subr.mxu0 0.0
    %553 = vmatpush1.msra.mxu0 %v516
    %554 = vmatprep.subr.mxu0 0.0
    %555 = vmatpush1.msra.mxu0 %v517
    %556 = vmatprep.subr.mxu0 0.0
    %557 = vmatpush1.msra.mxu0 %v518
    %558 = vmatprep.subr.mxu0 0.0
    %559 = vmatpush1.msra.mxu0 0.0
    %560 = vmatprep.subr.mxu0 0.0
    %561 = vmatpush1.msra.mxu0 0.0
    %562 = vmatprep.subr.mxu0 0.0
    %563 = vmatpush1.msra.mxu0 0.0
    %564 = vmatprep.subr.mxu0 0.0
    %565 = vmatpush1.msra.mxu0 0.0
    %566 = vmatprep.subr.mxu0 0.0
    %567 = vmatpush1.msra.mxu0 0.0
    %568 = vmatprep.subr.mxu0 0.0
    %569 = vmatpush1.msra.mxu0 0.0
    %570 = vmatprep.subr.mxu0 0.0
    %571 = vmatpush1.msra.mxu0 0.0
    %572 = vmatprep.subr.mxu0 0.0
    %573 = vmatpush1.msra.mxu0 0.0
    %574 = vmatprep.subr.mxu0 0.0
    %575 = vmatpush1.msra.mxu0 0.0
    %576 = vmatprep.subr.mxu0 0.0
    %577 = vmatpush1.msra.mxu0 0.0
    %578 = vmatprep.subr.mxu0 0.0
    %579 = vmatpush1.msra.mxu0 0.0
    %580 = vmatprep.subr.mxu0 0.0
    %581 = vmatpush1.msra.mxu0 0.0
    %582 = vmatprep.subr.mxu0 0.0
    %583 = vmatpush1.msra.mxu0 0.0
    %584 = vmatprep.subr.mxu0 0.0
    %585 = vmatpush1.msra.mxu0 0.0
    %586 = vmatprep.subr.mxu0 0.0
    %587 = vmatpush1.msra.mxu0 0.0
    %588 = vmatprep.subr.mxu0 0.0
    %589 = vmatpush1.msra.mxu0 0.0
    %590 = vmatprep.mubr.f32.mxu0 0.0
    %591 = vmatmul.mubr.f32.gmra.mrb[0].mxu0 %v502
    %v592 = vpop.f32.mrb[0].mxu0
    %v593 = vadd.f32 %v524, %v592
    %v594 = vpop.f32.mrb[0].mxu0
    %595 = vdwg.mxu0
    %596 = vst [vmem:[#allocation8] sm:$0xff] %v593
    %597 = vst [vmem:[#allocation9] sm:$0xff] %v502
    // Predicated region
    $region50: #{tpu_custom_call.1} parent=1 // pred_check
      _
    $region51: #{tpu_custom_call.1} parent=1 // pred_check_branch
      %599 = sbr.rel (0) target = $region53
    $region52: #{tpu_custom_call.1} parent=1 // pred_region
      %s601 = ssub.s32 128, 128
      %602 = vsyncadd [#allocation4], %s601
      %s604 = sshll.u32 [#allocation8], 4
      %s605 = int_to_ptr.vmem [resolvable:$true] %s604
      %607 = dma.vmem_to_hbm [thread:$0]  %s605, 128, %s9, [#allocation4]
    $region53: #{tpu_custom_call.1} parent=1 // pred_fallthru
      _
    // Predicated region
    $region54: #{tpu_custom_call.1} parent=1 // pred_check
      _
    $region55: #{tpu_custom_call.1} parent=1 // pred_check_branch
      %609 = sbr.rel (0) target = $region57
    $region56: #{tpu_custom_call.1} parent=1 // pred_region
      %s611 = ssub.s32 128, 128
      %612 = vsyncadd [#allocation10], %s611
      %s614 = sshll.u32 [#allocation9], 4
      %s615 = int_to_ptr.vmem [resolvable:$true] %s614
      %617 = dma.vmem_to_hbm [thread:$0]  %s615, 128, %s10, [#allocation10]
    $region57: #{tpu_custom_call.1} parent=1 // pred_fallthru
      _
    // Predicated region
    $region58: #{tpu_custom_call.1} parent=1 // pred_check
      _
    $region59: #{tpu_custom_call.1} parent=1 // pred_check_branch
      %619 = sbr.rel (0) target = $region61
    $region60: #{tpu_custom_call.1} parent=1 // pred_region
      %620 = dma.done [#allocation4], 128
    $region61: #{tpu_custom_call.1} parent=1 // pred_fallthru
      _
    // Predicated region
    $region62: #{tpu_custom_call.1} parent=1 // pred_check
      _
    $region63: #{tpu_custom_call.1} parent=1 // pred_check_branch
      %622 = sbr.rel (0) target = $region65
    $region64: #{tpu_custom_call.1} parent=1 // pred_region
      %623 = dma.done [#allocation10], 128
    $region65: #{tpu_custom_call.1} parent=1 // pred_fallthru
      _
    %624 = vsyncpa [#allocation3], 1
    %625 = vsyncpa [#allocation6], 1
    %626 = vsyncpa [#allocation4], 1
    %627 = vsyncpa [#allocation10], 1

</llo_original>
